<compile_context>
chip_gen: v6e
topology: v6e:2x2x1
jax: 0.10.0
libtpu: 0.0.40
codegen_flags: <defaults>
</compile_context>

<pallas_src>
import functools

import numpy as np
import jax
import jax.numpy as jnp
from jax.experimental import pallas as pl
from jax.experimental.pallas import tpu as pltpu


# --------------------------------------------------------------------------------------
# host-side constants (kaiser-sinc lowpass, banded fused position operator)
# --------------------------------------------------------------------------------------

def _kaiser_lowpass(kernel_size: int, scale: int) -> np.ndarray:
    """Reimplements scipy.signal kaiser_atten/kaiser_beta/windows.kaiser + sinc."""
    width = scale ** (-1.0)
    atten = 2.285 * (kernel_size - 1) * np.pi * width + 7.95  # kaiser_atten
    if atten > 50:                                            # kaiser_beta
        beta = 0.1102 * (atten - 8.7)
    elif atten > 21:
        beta = 0.5842 * (atten - 21) ** 0.4 + 0.07886 * (atten - 21)
    else:
        beta = 0.0
    n = np.arange(kernel_size)
    alpha = (kernel_size - 1) / 2.0
    kaiser = np.i0(beta * np.sqrt(np.clip(1.0 - ((n - alpha) / alpha) ** 2, 0.0, 1.0)))
    kaiser = kaiser / np.i0(beta)
    x = np.arange(kernel_size) - kernel_size // 2
    kern = np.sinc(x / scale) * kaiser
    kern = kern / kern.sum()
    return kern.astype(np.float32)


def _pick_lane_tile(L: int) -> int:
    """128-aligned lane tile; L is padded up to a multiple of it on the host."""
    for c in (512, 384, 256, 128):
        if L % c == 0:
            return c
    return min(512, -(-L // 128) * 128)


def _pick_batch_block(B: int, D: int, target_rows: int = 256) -> int:
    """Pack batch elements along sublanes targeting R = Bblk*D in [128, target_rows]."""
    divisors = [bb for bb in range(1, B + 1) if B % bb == 0]
    ok = [bb for bb in divisors if (bb * D) % 8 == 0 and bb * D <= target_rows]
    if ok:
        ge = [bb for bb in ok if bb * D >= 128]
        # smallest block that reaches 128 rows keeps nBt (parallel grid steps) maximal
        return min(ge) if ge else max(ok)
    # whole batch in one block: block rows equal the full B*D dim (allowed by (8,128) rule)
    return B


@functools.lru_cache(maxsize=32)
def _build_constants(l: int, scale: int, K: int, Lc: int, Lp: int, lpk_bytes: bytes):
    """Banded fused position operator Qb[j, t, q, m] and the FIR coverage s of the conv
    bias.  Qb carries the weight from input position p = p0[j]+q to output position
    n = j*Lc+m via conv tap t, with zero-stuffing, conv padding (scale-1) and FIR zero
    padding (K//2) all folded in.  Cached across calls (depends only on static shapes
    and the fixed lowpass taps)."""
    lpk = np.frombuffer(lpk_bytes, dtype=np.float32)
    K2 = K // 2
    Kc = 2 * scale - 1
    L = l * scale
    nLt = Lp // Lc

    # per-tile input window [p0, p0+band)
    j = np.arange(nLt)
    p_min = np.maximum(0, -((-(j * Lc - (scale - 1) - K2)) // scale))   # ceil division
    p_max = np.minimum(l - 1, (j * Lc + Lc - 1 + K2) // scale)
    need = int(np.max(p_max - p_min + 1))
    band = max(8, -(-need // 8) * 8)                                    # sublane-aligned
    p0 = p_min.astype(np.int64)
    l_pad = int(np.max(p0)) + band

    # banded operator (vectorized numpy build)
    jj = j[:, None, None, None]
    tt = np.arange(Kc)[None, :, None, None]
    qq = np.arange(band)[None, None, :, None]
    mm = np.arange(Lc)[None, None, None, :]
    p = p0[:, None, None, None] + qq                 # absolute input position
    n = jj * Lc + mm                                 # absolute output position
    ypos = p * scale + (scale - 1) - tt              # conv-output position hit via tap t
    d = ypos - n
    valid = (p < l) & (n < L) & (ypos >= 0) & (ypos < L) & (np.abs(d) <= K2)
    idx = np.clip(d + K2, 0, K - 1)
    Qb = np.where(valid, lpk[idx], np.float32(0)).astype(np.float32)    # (nLt,Kc,band,Lc)

    # FIR coverage of the (constant) conv bias at each padded output position
    nn = np.arange(Lp)
    lo = np.clip(K2 - nn, 0, K)
    hi = np.clip(L + K2 - nn, 0, K)
    csum = np.concatenate([[0.0], np.cumsum(lpk.astype(np.float64))])
    s = np.where((nn < L) & (hi > lo), csum[hi] - csum[lo], 0.0).astype(np.float32)

    return Qb, s, p0, band, l_pad


# --------------------------------------------------------------------------------------
# kernel
# --------------------------------------------------------------------------------------

def _aa_upsample_kernel(x_ref, q_ref, w_ref, pb_ref, projb_ref, s_ref, out_ref):
    # x_ref:     (R, band)        batch-packed input window for this L tile / batch block
    # q_ref:     (Kc, band, Lc)   banded fused upsample+conv-shift+FIR position operator
    # w_ref:     (Kc, R, R)       block-diag(proj_w @ conv_w[:, :, t]) channel weights
    # pb_ref:    (R, 1)           proj_w @ conv_bias (tiled over the batch pack), f32
    # projb_ref: (R, 1)           projection bias (tiled), f32
    # s_ref:     (1, Lc)          FIR coverage of the conv bias for this tile, f32
    # out_ref:   (R, Lc)
    Kc = q_ref.shape[0]
    x = x_ref[...]

    # bias terms: conv bias through the FIR edge coverage, plus the projection bias
    acc = pb_ref[...] * s_ref[...] + projb_ref[...]                       # (R, Lc) f32

    # channel mix first (narrow (R,band) side), then one band-deep position matmul per tap
    for t in range(Kc):
        v = jnp.dot(w_ref[t], x, preferred_element_type=jnp.float32)      # (R, band)
        v = v.astype(x.dtype)
        acc = acc + jnp.dot(v, q_ref[t], preferred_element_type=jnp.float32)  # (R, Lc)

    out_ref[...] = acc.astype(out_ref.dtype)


# --------------------------------------------------------------------------------------
# wrapper
# --------------------------------------------------------------------------------------

def aa_upsample_1d(x, conv_w, conv_b, lpk, proj_w, proj_b, scale,
                   *, compute_dtype=jnp.bfloat16):
    """x: (B, D, l); conv_w: (D, D, 2*scale-1) [out,in,tap]; proj_w: (D, D); lpk: (K,)."""
    B, D, l = x.shape
    L = l * scale
    Kc = 2 * scale - 1
    K = int(lpk.shape[0])
    lpk_np = np.asarray(lpk, np.float32)            # fixed buffer -> compile-time constant

    # output lane tiling (padded so every tile is 128-aligned and lane-dense)
    Lc = _pick_lane_tile(L)
    Lp = -(-L // Lc) * Lc
    nLt = Lp // Lc

    # batch packing along sublanes
    Bblk = _pick_batch_block(B, D)
    nBt = B // Bblk
    R = Bblk * D

    # ---- host-side cached constants (banded position operator + bias coverage) ----
    qb_np, s_np, p0_np, band, l_pad = _build_constants(l, scale, K, Lc, Lp, lpk_np.tobytes())
    q_banded = jnp.asarray(qb_np).astype(compute_dtype)           # (nLt, Kc, band, Lc)
    s_row = jnp.asarray(s_np.reshape(1, Lp), jnp.float32)

    # ---- weight / bias folding (conv taps fused with the 1x1 projection) ----
    w_fused = jnp.einsum('co,oit->tci', proj_w, conv_w).astype(jnp.float32)   # (Kc, D, D)
    eye = jnp.eye(Bblk, dtype=jnp.float32)
    w_blk = jnp.einsum('ab,tij->taibj', eye, w_fused).reshape(Kc, R, R).astype(compute_dtype)
    pb = jnp.tile(proj_w.astype(jnp.float32) @ conv_b.astype(jnp.float32), Bblk).reshape(R, 1)
    projb = jnp.tile(proj_b.astype(jnp.float32), Bblk).reshape(R, 1)

    # ---- per-L-tile input windows (banded; last dim == full band -> lane-dense block) ----
    x_flat = x.reshape(B * D, l)
    if l_pad > l:
        x_flat = jnp.pad(x_flat, ((0, 0), (0, l_pad - l)))
    win_idx = p0_np[:, None] + np.arange(band)[None, :]          # (nLt, band), static
    x_win = jnp.transpose(x_flat[:, win_idx], (1, 0, 2)).astype(compute_dtype)  # (nLt, B*D, band)

    # ---- cost / VMEM budgeting ----
    flops = 2 * (B * D) * Kc * band * Lp + 2 * (B * D) * R * Kc * band * nLt
    itemsize = jnp.dtype(compute_dtype).itemsize
    bytes_accessed = (q_banded.size * itemsize + x_win.size * itemsize
                      + (B * D) * Lp * x.dtype.itemsize + w_blk.size * itemsize)
    block_bytes = (Kc * band * Lc * itemsize + R * band * itemsize
                   + Kc * R * R * itemsize + 3 * R * Lc * 4 + Lc * 4 + 2 * R * 4)
    vmem_limit = int(min(48 * 1024 * 1024, max(32 * 1024 * 1024, 6 * block_bytes)))

    out_flat = pl.pallas_call(
        _aa_upsample_kernel,
        out_shape=jax.ShapeDtypeStruct((B * D, Lp), x.dtype),
        # L tile OUTER, batch INNER: the (large) Q block index only changes on the outer
        # axis, so each Q tile is fetched from HBM exactly once and reused across batch.
        grid=(nLt, nBt),
        in_specs=[
            pl.BlockSpec((None, R, band), lambda j, b: (j, b, 0)),        # x window
            pl.BlockSpec((None, Kc, band, Lc), lambda j, b: (j, 0, 0, 0)),  # banded Q
            pl.BlockSpec((Kc, R, R), lambda j, b: (0, 0, 0)),             # fused weights
            pl.BlockSpec((R, 1), lambda j, b: (0, 0)),                    # conv bias (fused)
            pl.BlockSpec((R, 1), lambda j, b: (0, 0)),                    # proj bias
            pl.BlockSpec((1, Lc), lambda j, b: (0, j)),                   # bias FIR coverage
        ],
        out_specs=pl.BlockSpec((R, Lc), lambda j, b: (b, j)),
        compiler_params=pltpu.CompilerParams(
            dimension_semantics=("parallel", "parallel"),
            vmem_limit_bytes=vmem_limit),
        cost_estimate=pl.CostEstimate(flops=int(flops), transcendentals=0,
                                      bytes_accessed=int(bytes_accessed)),
    )(x_win, q_banded, w_blk, pb, projb, s_row)

    return out_flat[:, :L].reshape(B, D, L)


# --------------------------------------------------------------------------------------
# pure-JAX reference + test
# --------------------------------------------------------------------------------------

def _reference(x, conv_w, conv_b, lpk, proj_w, proj_b, scale):
    """Pure-JAX reference using lax convs (cross-correlation, like PyTorch)."""
    B, D, l = x.shape
    L = l * scale
    K = lpk.shape[0]
    up = jnp.zeros((B, D, L), x.dtype).at[:, :, ::scale].set(x)
    y = jax.lax.conv_general_dilated(
        up, conv_w, window_strides=(1,), padding=[(scale - 1, scale - 1)],
        dimension_numbers=("NCH", "OIH", "NCH")) + conv_b[None, :, None]
    dw = jnp.broadcast_to(lpk[None, None, :], (D, 1, K))
    filt = jax.lax.conv_general_dilated(
        y, dw, window_strides=(1,), padding=[(K // 2, K // 2)],
        feature_group_count=D, dimension_numbers=("NCH", "OIH", "NCH"))
    return jnp.einsum("oi,bil->bol", proj_w, filt) + proj_b[None, :, None]


if __name__ == "__main__":
    B, D, l, S, K = 2, 4, 16, 2, 17

    key = jax.random.PRNGKey(0)
    k1, k2, k3, k4, k5 = jax.random.split(key, 5)
    x = jax.random.normal(k1, (B, D, l), jnp.float32)
    # deterministic synthetic parameters (shapes match nn.Conv1d weights)
    conv_w = 0.1 * jax.random.normal(k2, (D, D, 2 * S - 1), jnp.float32)  # (out, in, k)
    conv_b = 0.1 * jax.random.normal(k3, (D,), jnp.float32)
    proj_w = 0.1 * jax.random.normal(k4, (D, D), jnp.float32)             # 1x1 conv
    proj_b = 0.1 * jax.random.normal(k5, (D,), jnp.float32)
    lpk = jnp.asarray(_kaiser_lowpass(K, S))                              # fixed buffer

    ref = _reference(x, conv_w, conv_b, lpk, proj_w, proj_b, S)

    # f32 operand path: tight agreement with the lax-conv reference
    out32 = aa_upsample_1d(x, conv_w, conv_b, lpk, proj_w, proj_b, S,
                           compute_dtype=jnp.float32)
    out32 = jax.block_until_ready(out32)
    assert out32.shape == (B, D, l * S)
    np.testing.assert_allclose(np.asarray(out32), np.asarray(ref), atol=2e-3, rtol=2e-3)

    # bf16 operand path (default / production, HBM-bound): looser tolerance
    out16 = aa_upsample_1d(x, conv_w, conv_b, lpk, proj_w, proj_b, S)
    out16 = jax.block_until_ready(out16)
    np.testing.assert_allclose(np.asarray(out16), np.asarray(ref), atol=3e-2, rtol=3e-2)

    print("KERNEL_OK")
</pallas_src>

<mosaic_0001>
module attributes {stable_mosaic.version = 11 : i64} {
  func.func @_aa_upsample_kernel(%arg0: i32, %arg1: i32, %arg2: memref<1x8x16xf32, #tpu.memory_space<vmem>>, %arg3: memref<1x3x16x128xf32, #tpu.memory_space<vmem>>, %arg4: memref<3x8x8xf32, #tpu.memory_space<vmem>>, %arg5: memref<8x1xf32, #tpu.memory_space<vmem>>, %arg6: memref<8x1xf32, #tpu.memory_space<vmem>>, %arg7: memref<1x128xf32, #tpu.memory_space<vmem>>, %arg8: memref<8x128xf32, #tpu.memory_space<vmem>>) attributes {dimension_semantics = [#tpu.dimension_semantics<parallel>, #tpu.dimension_semantics<parallel>], iteration_bounds = array<i64: 1, 1>, scalar_prefetch = 0 : i64, scratch_operands = 0 : i64, tpu.core_type = #tpu.core_type<tc>, window_params = [{transform_indices = @transform_0, window_bounds = array<i64: 1, 8, 16>}, {transform_indices = @transform_1, window_bounds = array<i64: 1, 3, 16, 128>}, {pipeline_mode = #tpu.pipeline_mode<synchronous>, transform_indices = @transform_2, window_bounds = array<i64: 3, 8, 8>}, {pipeline_mode = #tpu.pipeline_mode<synchronous>, transform_indices = @transform_3, window_bounds = array<i64: 8, 1>}, {pipeline_mode = #tpu.pipeline_mode<synchronous>, transform_indices = @transform_4, window_bounds = array<i64: 8, 1>}, {transform_indices = @transform_5, window_bounds = array<i64: 1, 128>}, {transform_indices = @transform_6, window_bounds = array<i64: 8, 128>}]} {
    %c0 = arith.constant 0 : index
    %c0_0 = arith.constant 0 : index
    %c0_1 = arith.constant 0 : index
    %0 = vector.load %arg2[%c0, %c0_0, %c0_1] : memref<1x8x16xf32, #tpu.memory_space<vmem>>, vector<1x8x16xf32>
    %1 = vector.shape_cast %0 : vector<1x8x16xf32> to vector<8x16xf32>
    %c0_2 = arith.constant 0 : index
    %c0_3 = arith.constant 0 : index
    %2 = vector.load %arg5[%c0_2, %c0_3] : memref<8x1xf32, #tpu.memory_space<vmem>>, vector<8x1xf32>
    %c0_4 = arith.constant 0 : index
    %c0_5 = arith.constant 0 : index
    %3 = vector.load %arg7[%c0_4, %c0_5] : memref<1x128xf32, #tpu.memory_space<vmem>>, vector<1x128xf32>
    %4 = vector.broadcast %2 : vector<8x1xf32> to vector<8x128xf32>
    %5 = vector.broadcast %3 : vector<1x128xf32> to vector<8x128xf32>
    %6 = arith.mulf %4, %5 : vector<8x128xf32>
    %c0_6 = arith.constant 0 : index
    %c0_7 = arith.constant 0 : index
    %7 = vector.load %arg6[%c0_6, %c0_7] : memref<8x1xf32, #tpu.memory_space<vmem>>, vector<8x1xf32>
    %8 = vector.broadcast %7 : vector<8x1xf32> to vector<8x128xf32>
    %9 = arith.addf %6, %8 : vector<8x128xf32>
    %c0_8 = arith.constant 0 : index
    %c0_9 = arith.constant 0 : index
    %c0_10 = arith.constant 0 : index
    %10 = vector.load %arg4[%c0_8, %c0_9, %c0_10] : memref<3x8x8xf32, #tpu.memory_space<vmem>>, vector<1x8x8xf32>
    %11 = vector.shape_cast %10 : vector<1x8x8xf32> to vector<8x8xf32>
    %cst = arith.constant dense<0.000000e+00> : vector<8x16xf32>
    %12 = tpu.matmul %11, %1, %cst {dimension_numbers = #tpu.dot_dimension_numbers<[1], [0], [0], [1], [0, 0, 1, 1], [], []>} : vector<8x8xf32>, vector<8x16xf32>, vector<8x16xf32> -> vector<8x16xf32>
    %c0_11 = arith.constant 0 : index
    %c0_12 = arith.constant 0 : index
    %c0_13 = arith.constant 0 : index
    %c0_14 = arith.constant 0 : index
    %13 = vector.load %arg3[%c0_11, %c0_12, %c0_13, %c0_14] : memref<1x3x16x128xf32, #tpu.memory_space<vmem>>, vector<1x1x16x128xf32>
    %14 = vector.shape_cast %13 : vector<1x1x16x128xf32> to vector<16x128xf32>
    %cst_15 = arith.constant dense<0.000000e+00> : vector<8x128xf32>
    %15 = tpu.matmul %12, %14, %cst_15 {dimension_numbers = #tpu.dot_dimension_numbers<[1], [0], [0], [1], [0, 0, 1, 1], [], []>} : vector<8x16xf32>, vector<16x128xf32>, vector<8x128xf32> -> vector<8x128xf32>
    %16 = arith.addf %9, %15 : vector<8x128xf32>
    %c1 = arith.constant 1 : index
    %c0_16 = arith.constant 0 : index
    %c0_17 = arith.constant 0 : index
    %17 = vector.load %arg4[%c1, %c0_16, %c0_17] : memref<3x8x8xf32, #tpu.memory_space<vmem>>, vector<1x8x8xf32>
    %18 = vector.shape_cast %17 : vector<1x8x8xf32> to vector<8x8xf32>
    %cst_18 = arith.constant dense<0.000000e+00> : vector<8x16xf32>
    %19 = tpu.matmul %18, %1, %cst_18 {dimension_numbers = #tpu.dot_dimension_numbers<[1], [0], [0], [1], [0, 0, 1, 1], [], []>} : vector<8x8xf32>, vector<8x16xf32>, vector<8x16xf32> -> vector<8x16xf32>
    %c0_19 = arith.constant 0 : index
    %c1_20 = arith.constant 1 : index
    %c0_21 = arith.constant 0 : index
    %c0_22 = arith.constant 0 : index
    %20 = vector.load %arg3[%c0_19, %c1_20, %c0_21, %c0_22] : memref<1x3x16x128xf32, #tpu.memory_space<vmem>>, vector<1x1x16x128xf32>
    %21 = vector.shape_cast %20 : vector<1x1x16x128xf32> to vector<16x128xf32>
    %cst_23 = arith.constant dense<0.000000e+00> : vector<8x128xf32>
    %22 = tpu.matmul %19, %21, %cst_23 {dimension_numbers = #tpu.dot_dimension_numbers<[1], [0], [0], [1], [0, 0, 1, 1], [], []>} : vector<8x16xf32>, vector<16x128xf32>, vector<8x128xf32> -> vector<8x128xf32>
    %23 = arith.addf %16, %22 : vector<8x128xf32>
    %c2 = arith.constant 2 : index
    %c0_24 = arith.constant 0 : index
    %c0_25 = arith.constant 0 : index
    %24 = vector.load %arg4[%c2, %c0_24, %c0_25] : memref<3x8x8xf32, #tpu.memory_space<vmem>>, vector<1x8x8xf32>
    %25 = vector.shape_cast %24 : vector<1x8x8xf32> to vector<8x8xf32>
    %cst_26 = arith.constant dense<0.000000e+00> : vector<8x16xf32>
    %26 = tpu.matmul %25, %1, %cst_26 {dimension_numbers = #tpu.dot_dimension_numbers<[1], [0], [0], [1], [0, 0, 1, 1], [], []>} : vector<8x8xf32>, vector<8x16xf32>, vector<8x16xf32> -> vector<8x16xf32>
    %c0_27 = arith.constant 0 : index
    %c2_28 = arith.constant 2 : index
    %c0_29 = arith.constant 0 : index
    %c0_30 = arith.constant 0 : index
    %27 = vector.load %arg3[%c0_27, %c2_28, %c0_29, %c0_30] : memref<1x3x16x128xf32, #tpu.memory_space<vmem>>, vector<1x1x16x128xf32>
    %28 = vector.shape_cast %27 : vector<1x1x16x128xf32> to vector<16x128xf32>
    %cst_31 = arith.constant dense<0.000000e+00> : vector<8x128xf32>
    %29 = tpu.matmul %26, %28, %cst_31 {dimension_numbers = #tpu.dot_dimension_numbers<[1], [0], [0], [1], [0, 0, 1, 1], [], []>} : vector<8x16xf32>, vector<16x128xf32>, vector<8x128xf32> -> vector<8x128xf32>
    %30 = arith.addf %23, %29 : vector<8x128xf32>
    %c0_32 = arith.constant 0 : index
    %c0_33 = arith.constant 0 : index
    %31 = vector.load %arg8[%c0_32, %c0_33] : memref<8x128xf32, #tpu.memory_space<vmem>>, vector<8x128xf32>
    tpu.vector_store %arg8[%c0_32, %c0_33], %30 {strides = array<i32>} : memref<8x128xf32, #tpu.memory_space<vmem>>, vector<8x128xf32>,
    return
  }
  func.func @transform_0(%arg0: i32, %arg1: i32) -> (i32, i32, i32) {
    %c0_i32 = arith.constant 0 : i32
    %c0_i32_0 = arith.constant 0 : i32
    return %arg0, %arg1, %c0_i32 : i32, i32, i32
  }
  func.func @transform_1(%arg0: i32, %arg1: i32) -> (i32, i32, i32, i32) {
    %c0_i32 = arith.constant 0 : i32
    %c0_i32_0 = arith.constant 0 : i32
    %c0_i32_1 = arith.constant 0 : i32
    %c0_i32_2 = arith.constant 0 : i32
    return %arg0, %c0_i32, %c0_i32_0, %c0_i32_1 : i32, i32, i32, i32
  }
  func.func @transform_2(%arg0: i32, %arg1: i32) -> (i32, i32, i32) {
    %c0_i32 = arith.constant 0 : i32
    %c0_i32_0 = arith.constant 0 : i32
    %c0_i32_1 = arith.constant 0 : i32
    %c0_i32_2 = arith.constant 0 : i32
    return %c0_i32, %c0_i32_0, %c0_i32_1 : i32, i32, i32
  }
  func.func @transform_3(%arg0: i32, %arg1: i32) -> (i32, i32) {
    %c0_i32 = arith.constant 0 : i32
    %c0_i32_0 = arith.constant 0 : i32
    %c0_i32_1 = arith.constant 0 : i32
    return %c0_i32, %c0_i32_0 : i32, i32
  }
  func.func @transform_4(%arg0: i32, %arg1: i32) -> (i32, i32) {
    %c0_i32 = arith.constant 0 : i32
    %c0_i32_0 = arith.constant 0 : i32
    %c0_i32_1 = arith.constant 0 : i32
    return %c0_i32, %c0_i32_0 : i32, i32
  }
  func.func @transform_5(%arg0: i32, %arg1: i32) -> (i32, i32) {
    %c0_i32 = arith.constant 0 : i32
    %c0_i32_0 = arith.constant 0 : i32
    return %c0_i32, %arg0 : i32, i32
  }
  func.func @transform_6(%arg0: i32, %arg1: i32) -> (i32, i32) {
    %c0_i32 = arith.constant 0 : i32
    return %arg1, %arg0 : i32, i32
  }
}

</mosaic_0001>

<llo_original>
// kernel: tpu_custom_call.1
$region0: #{tpu_custom_call.1}
  #allocation0 [shape = 'u32[]', space=smem, size = 0x4, offset = 0x4, fixed_abs, tag = 'smem constant byte address 0x4 - core index']
  #allocation1 [shape = 'u32[144,128]{1,0:T(1,128)}', space=vmem, size = 0x12000, scoped, tag = 'internal scratch']
  %s0 = inlined_call_operand.vmem [shape: f32[1,8,16], index: 0, kind: input, shape index: {}]
  %s1 = inlined_call_operand.hbm [shape: f32[1,3,16,128], index: 1, kind: input, shape index: {}]
  %s2 = inlined_call_operand.hbm [shape: f32[3,8,8], index: 2, kind: input, shape index: {}]
  %s3 = inlined_call_operand.vmem [shape: f32[8,1], index: 3, kind: input, shape index: {}]
  %s4 = inlined_call_operand.vmem [shape: f32[8,1], index: 4, kind: input, shape index: {}]
  %s5 = inlined_call_operand.vmem [shape: f32[1,128], index: 5, kind: input, shape index: {}]
  %s6 = inlined_call_operand.hbm [shape: f32[8,128], index: 6, kind: output, shape index: {}]
  %s7 = sld [smem:[#allocation0]]
  $region42: #{tpu_custom_call.1} parent=0
    _
  %s9 = ssub.s32 1, %s7
  %s10 = scalar_select 0, %s9, %s7
  $region1: #{tpu_custom_call.1} parent=0
    #allocation2 [shape = 'u8[24576]{0}', space=vmem, size = 0x6000, scoped, tag = 'input window, operand 1, single buffered']
    #allocation3 [shape = 's32[1]{0}', space=sflag, size = 0x4, scoped, tag = 'scoped memory for tpu_custom_call.1']
    #allocation4 [shape = 's32[1]{0}', space=sflag, size = 0x4, scoped, tag = 'scoped memory for tpu_custom_call.1']
    #allocation5 [shape = 'u8[12288]{0}', space=vmem, size = 0x3000, scoped, tag = 'input window, operand 2, single buffered']
    #allocation6 [shape = 's32[1]{0}', space=sflag, size = 0x4, scoped, tag = 'scoped memory for tpu_custom_call.1']
    #allocation7 [shape = 'u8[4096]{0}', space=vmem, size = 0x1000, scoped, tag = 'output window, operand 0, single buffered']
    %11 = vsyncpa [#allocation3], 0
    %12 = vsyncpa [#allocation6], 0
    %13 = vsyncpa [#allocation4], 0
    // Predicated region
    $region2: #{tpu_custom_call.1} parent=1 // pred_check
      _
    $region3: #{tpu_custom_call.1} parent=1 // pred_check_branch
      %15 = sbr.rel (0) target = $region5
    $region4: #{tpu_custom_call.1} parent=1 // pred_region
      _
    $region5: #{tpu_custom_call.1} parent=1 // pred_fallthru
      _
    // Predicated region
    $region6: #{tpu_custom_call.1} parent=1 // pred_check
      _
    $region7: #{tpu_custom_call.1} parent=1 // pred_check_branch
      %17 = sbr.rel (0) target = $region9
    $region8: #{tpu_custom_call.1} parent=1 // pred_region
      %s19 = ssub.s32 768, 768
      %20 = vsyncadd [#allocation3], %s19
      %s21 = sshll.u32 [#allocation2], 4
      %s22 = int_to_ptr.vmem [resolvable:$true] %s21
      %27 = dma.hbm_to_vmem [thread:$0]  %s1, 768, %s22, [#allocation3], 128, 128, 8
    $region9: #{tpu_custom_call.1} parent=1 // pred_fallthru
      _
    // Predicated region
    $region10: #{tpu_custom_call.1} parent=1 // pred_check
      _
    $region11: #{tpu_custom_call.1} parent=1 // pred_check_branch
      %29 = sbr.rel (0) target = $region13
    $region12: #{tpu_custom_call.1} parent=1 // pred_region
      %s31 = ssub.s32 384, 384
      %32 = vsyncadd [#allocation6], %s31
      %s33 = sshll.u32 [#allocation5], 4
      %s34 = int_to_ptr.vmem [resolvable:$true] %s33
      %39 = dma.hbm_to_vmem [thread:$0]  %s2, 384, %s34, [#allocation6], 128, 128, 8
    $region13: #{tpu_custom_call.1} parent=1 // pred_fallthru
      _
    // Predicated region
    $region14: #{tpu_custom_call.1} parent=1 // pred_check
      _
    $region15: #{tpu_custom_call.1} parent=1 // pred_check_branch
      %41 = sbr.rel (0) target = $region17
    $region16: #{tpu_custom_call.1} parent=1 // pred_region
      _
    $region17: #{tpu_custom_call.1} parent=1 // pred_fallthru
      _
    // Predicated region
    $region18: #{tpu_custom_call.1} parent=1 // pred_check
      _
    $region19: #{tpu_custom_call.1} parent=1 // pred_check_branch
      %43 = sbr.rel (0) target = $region21
    $region20: #{tpu_custom_call.1} parent=1 // pred_region
      _
    $region21: #{tpu_custom_call.1} parent=1 // pred_fallthru
      _
    // Predicated region
    $region22: #{tpu_custom_call.1} parent=1 // pred_check
      _
    $region23: #{tpu_custom_call.1} parent=1 // pred_check_branch
      %45 = sbr.rel (0) target = $region25
    $region24: #{tpu_custom_call.1} parent=1 // pred_region
      _
    $region25: #{tpu_custom_call.1} parent=1 // pred_fallthru
      _
    // Predicated region
    $region26: #{tpu_custom_call.1} parent=1 // pred_check
      _
    $region27: #{tpu_custom_call.1} parent=1 // pred_check_branch
      %47 = sbr.rel (0) target = $region29
    $region28: #{tpu_custom_call.1} parent=1 // pred_region
      %48 = dma.done [#allocation3], 768
    $region29: #{tpu_custom_call.1} parent=1 // pred_fallthru
      _
    // Predicated region
    $region30: #{tpu_custom_call.1} parent=1 // pred_check
      _
    $region31: #{tpu_custom_call.1} parent=1 // pred_check_branch
      %50 = sbr.rel (0) target = $region33
    $region32: #{tpu_custom_call.1} parent=1 // pred_region
      %51 = dma.done [#allocation6], 384
    $region33: #{tpu_custom_call.1} parent=1 // pred_fallthru
      _
    %v52 = vld [vmem:[%s0] sm:$0xff]
    %v53 = vld [vmem:[%s3] sm:$0xff]
    %v54 = vld [vmem:[%s5] sm:$0x1]
    %56 = vset.pattern.permute.xlu0 0
    %57 = vperm.xlu0 %56, %v53
    %v58 = vpop.permute.xlu0 %57
    %v61 = vlaneseq
    %v62 = vshrl.u32 %v61, 7
    %v63 = vsub.s32 0, %v62
    %v64 = vrot.slane %v54, %v63
    %v66 = vmul.f32 %v58, %v64
    %v67 = vld [vmem:[%s4] sm:$0xff]
    %69 = vset.pattern.permute.xlu0 0
    %70 = vperm.xlu0 %69, %v67
    %v71 = vpop.permute.xlu0 %70
    %v73 = vadd.f32 %v66, %v71
    %v74 = vld [vmem:[#allocation5] sm:$0xff]
    %vm75 = vcmask 64512
    %v77 = vsel %vm75, %v74, 0
    %79 = vmatprep.subr.mxu0 0.0
    %80 = vmatpush1.msra.mxu0 0.0
    %81 = vmatprep.subr.mxu0 0.0
    %82 = vmatpush1.msra.mxu0 0.0
    %83 = vmatprep.subr.mxu0 0.0
    %84 = vmatpush1.msra.mxu0 0.0
    %85 = vmatprep.subr.mxu0 0.0
    %86 = vmatpush1.msra.mxu0 0.0
    %87 = vmatprep.subr.mxu0 0.0
    %88 = vmatpush1.msra.mxu0 0.0
    %89 = vmatprep.subr.mxu0 0.0
    %90 = vmatpush1.msra.mxu0 0.0
    %91 = vmatprep.subr.mxu0 0.0
    %92 = vmatpush1.msra.mxu0 0.0
    %93 = vmatprep.subr.mxu0 0.0
    %94 = vmatpush1.msra.mxu0 0.0
    %95 = vmatprep.subr.mxu0 0.0
    %96 = vmatpush1.msra.mxu0 0.0
    %97 = vmatprep.subr.mxu0 0.0
    %98 = vmatpush1.msra.mxu0 0.0
    %99 = vmatprep.subr.mxu0 0.0
    %100 = vmatpush1.msra.mxu0 0.0
    %101 = vmatprep.subr.mxu0 0.0
    %102 = vmatpush1.msra.mxu0 0.0
    %103 = vmatprep.subr.mxu0 0.0
    %104 = vmatpush1.msra.mxu0 0.0
    %105 = vmatprep.subr.mxu0 0.0
    %106 = vmatpush1.msra.mxu0 0.0
    %107 = vmatprep.subr.mxu0 0.0
    %108 = vmatpush1.msra.mxu0 0.0
    %109 = vmatprep.subr.mxu0 0.0
    %110 = vmatpush1.msra.mxu0 %v52
    %111 = vmatprep.subr.mxu0 0.0
    %112 = vmatpush2.msra.mxu0 0.0
    %113 = vmatprep.subr.mxu0 0.0
    %114 = vmatpush2.msra.mxu0 0.0
    %115 = vmatprep.subr.mxu0 0.0
    %116 = vmatpush2.msra.mxu0 0.0
    %117 = vmatprep.subr.mxu0 0.0
    %118 = vmatpush2.msra.mxu0 0.0
    %119 = vmatprep.subr.mxu0 0.0
    %120 = vmatpush2.msra.mxu0 0.0
    %121 = vmatprep.subr.mxu0 0.0
    %122 = vmatpush2.msra.mxu0 0.0
    %123 = vmatprep.subr.mxu0 0.0
    %124 = vmatpush2.msra.mxu0 0.0
    %125 = vmatprep.subr.mxu0 0.0
    %126 = vmatpush2.msra.mxu0 0.0
    %127 = vmatprep.subr.mxu0 0.0
    %128 = vmatpush2.msra.mxu0 0.0
    %129 = vmatprep.subr.mxu0 0.0
    %130 = vmatpush2.msra.mxu0 0.0
    %131 = vmatprep.subr.mxu0 0.0
    %132 = vmatpush2.msra.mxu0 0.0
    %133 = vmatprep.subr.mxu0 0.0
    %134 = vmatpush2.msra.mxu0 0.0
    %135 = vmatprep.subr.mxu0 0.0
    %136 = vmatpush2.msra.mxu0 0.0
    %137 = vmatprep.subr.mxu0 0.0
    %138 = vmatpush2.msra.mxu0 0.0
    %139 = vmatprep.subr.mxu0 0.0
    %140 = vmatpush2.msra.mxu0 0.0
    %141 = vmatprep.subr.mxu0 0.0
    %142 = vmatpush2.msra.mxu0 0.0
    %143 = vmatprep.mubr.f32.mxu0 0.0
    %144 = vmatmul.mubr.f32.gmra.mxu0 %v77
    %v145 = vpop.f32.mrf.mxu0
    %v146 = vadd.f32 0.0, %v145
    %v147 = vpop.f32.mrf.mxu0
    %148 = vdwg.mxu0
    %v149 = vld [vmem:[#allocation2] sm:$0xff]
    %v150 = vld [vmem:[#allocation2 + $0x8] sm:$0xff]
    %vm151 = vcmask 130048
    %v153 = vsel %vm151, %v146, 0
    %155 = vmatprep.subr.mxu0 0.0
    %156 = vmatpush1.msra.mxu0 0.0
    %157 = vmatprep.subr.mxu0 0.0
    %158 = vmatpush1.msra.mxu0 0.0
    %159 = vmatprep.subr.mxu0 0.0
    %160 = vmatpush1.msra.mxu0 0.0
    %161 = vmatprep.subr.mxu0 0.0
    %162 = vmatpush1.msra.mxu0 0.0
    %163 = vmatprep.subr.mxu0 0.0
    %164 = vmatpush1.msra.mxu0 0.0
    %165 = vmatprep.subr.mxu0 0.0
    %166 = vmatpush1.msra.mxu0 0.0
    %167 = vmatprep.subr.mxu0 0.0
    %168 = vmatpush1.msra.mxu0 0.0
    %169 = vmatprep.subr.mxu0 0.0
    %170 = vmatpush1.msra.mxu0 0.0
    %171 = vmatprep.subr.mxu0 0.0
    %172 = vmatpush1.msra.mxu0 0.0
    %173 = vmatprep.subr.mxu0 0.0
    %174 = vmatpush1.msra.mxu0 0.0
    %175 = vmatprep.subr.mxu0 0.0
    %176 = vmatpush1.msra.mxu0 0.0
    %177 = vmatprep.subr.mxu0 0.0
    %178 = vmatpush1.msra.mxu0 0.0
    %179 = vmatprep.subr.mxu0 0.0
    %180 = vmatpush1.msra.mxu0 0.0
    %181 = vmatprep.subr.mxu0 0.0
    %182 = vmatpush1.msra.mxu0 0.0
    %183 = vmatprep.subr.mxu0 0.0
    %184 = vmatpush1.msra.mxu0 %v150
    %185 = vmatprep.subr.mxu0 0.0
    %186 = vmatpush1.msra.mxu0 %v149
    %187 = vmatprep.subr.mxu0 0.0
    %188 = vmatpush2.msra.mxu0 0.0
    %189 = vmatprep.subr.mxu0 0.0
    %190 = vmatpush2.msra.mxu0 0.0
    %191 = vmatprep.subr.mxu0 0.0
    %192 = vmatpush2.msra.mxu0 0.0
    %193 = vmatprep.subr.mxu0 0.0
    %194 = vmatpush2.msra.mxu0 0.0
    %195 = vmatprep.subr.mxu0 0.0
    %196 = vmatpush2.msra.mxu0 0.0
    %197 = vmatprep.subr.mxu0 0.0
    %198 = vmatpush2.msra.mxu0 0.0
    %199 = vmatprep.subr.mxu0 0.0
    %200 = vmatpush2.msra.mxu0 0.0
    %201 = vmatprep.subr.mxu0 0.0
    %202 = vmatpush2.msra.mxu0 0.0
    %203 = vmatprep.subr.mxu0 0.0
    %204 = vmatpush2.msra.mxu0 0.0
    %205 = vmatprep.subr.mxu0 0.0
    %206 = vmatpush2.msra.mxu0 0.0
    %207 = vmatprep.subr.mxu0 0.0
    %208 = vmatpush2.msra.mxu0 0.0
    %209 = vmatprep.subr.mxu0 0.0
    %210 = vmatpush2.msra.mxu0 0.0
    %211 = vmatprep.subr.mxu0 0.0
    %212 = vmatpush2.msra.mxu0 0.0
    %213 = vmatprep.subr.mxu0 0.0
    %214 = vmatpush2.msra.mxu0 0.0
    %215 = vmatprep.subr.mxu0 0.0
    %216 = vmatpush2.msra.mxu0 0.0
    %217 = vmatprep.subr.mxu0 0.0
    %218 = vmatpush2.msra.mxu0 0.0
    %219 = vmatprep.mubr.f32.mxu0 0.0
    %220 = vmatmul.mubr.f32.gmra.mxu0 %v153
    %v221 = vpop.f32.mrf.mxu0
    %v222 = vadd.f32 0.0, %v221
    %v223 = vpop.f32.mrf.mxu0
    %224 = vdwg.mxu0
    %v225 = vadd.f32 %v73, %v222
    %s226 = scalar_lea.vmem [#allocation5], 8
    %v227 = vld [vmem:[%s226] sm:$0xff]
    %v229 = vsel %vm75, %v227, 0
    %231 = vmatprep.subr.mxu0 0.0
    %232 = vmatpush1.msra.mxu0 0.0
    %233 = vmatprep.subr.mxu0 0.0
    %234 = vmatpush1.msra.mxu0 0.0
    %235 = vmatprep.subr.mxu0 0.0
    %236 = vmatpush1.msra.mxu0 0.0
    %237 = vmatprep.subr.mxu0 0.0
    %238 = vmatpush1.msra.mxu0 0.0
    %239 = vmatprep.subr.mxu0 0.0
    %240 = vmatpush1.msra.mxu0 0.0
    %241 = vmatprep.subr.mxu0 0.0
    %242 = vmatpush1.msra.mxu0 0.0
    %243 = vmatprep.subr.mxu0 0.0
    %244 = vmatpush1.msra.mxu0 0.0
    %245 = vmatprep.subr.mxu0 0.0
    %246 = vmatpush1.msra.mxu0 0.0
    %247 = vmatprep.subr.mxu0 0.0
    %248 = vmatpush1.msra.mxu0 0.0
    %249 = vmatprep.subr.mxu0 0.0
    %250 = vmatpush1.msra.mxu0 0.0
    %251 = vmatprep.subr.mxu0 0.0
    %252 = vmatpush1.msra.mxu0 0.0
    %253 = vmatprep.subr.mxu0 0.0
    %254 = vmatpush1.msra.mxu0 0.0
    %255 = vmatprep.subr.mxu0 0.0
    %256 = vmatpush1.msra.mxu0 0.0
    %257 = vmatprep.subr.mxu0 0.0
    %258 = vmatpush1.msra.mxu0 0.0
    %259 = vmatprep.subr.mxu0 0.0
    %260 = vmatpush1.msra.mxu0 0.0
    %261 = vmatprep.subr.mxu0 0.0
    %262 = vmatpush1.msra.mxu0 %v52
    %263 = vmatprep.subr.mxu0 0.0
    %264 = vmatpush2.msra.mxu0 0.0
    %265 = vmatprep.subr.mxu0 0.0
    %266 = vmatpush2.msra.mxu0 0.0
    %267 = vmatprep.subr.mxu0 0.0
    %268 = vmatpush2.msra.mxu0 0.0
    %269 = vmatprep.subr.mxu0 0.0
    %270 = vmatpush2.msra.mxu0 0.0
    %271 = vmatprep.subr.mxu0 0.0
    %272 = vmatpush2.msra.mxu0 0.0
    %273 = vmatprep.subr.mxu0 0.0
    %274 = vmatpush2.msra.mxu0 0.0
    %275 = vmatprep.subr.mxu0 0.0
    %276 = vmatpush2.msra.mxu0 0.0
    %277 = vmatprep.subr.mxu0 0.0
    %278 = vmatpush2.msra.mxu0 0.0
    %279 = vmatprep.subr.mxu0 0.0
    %280 = vmatpush2.msra.mxu0 0.0
    %281 = vmatprep.subr.mxu0 0.0
    %282 = vmatpush2.msra.mxu0 0.0
    %283 = vmatprep.subr.mxu0 0.0
    %284 = vmatpush2.msra.mxu0 0.0
    %285 = vmatprep.subr.mxu0 0.0
    %286 = vmatpush2.msra.mxu0 0.0
    %287 = vmatprep.subr.mxu0 0.0
    %288 = vmatpush2.msra.mxu0 0.0
    %289 = vmatprep.subr.mxu0 0.0
    %290 = vmatpush2.msra.mxu0 0.0
    %291 = vmatprep.subr.mxu0 0.0
    %292 = vmatpush2.msra.mxu0 0.0
    %293 = vmatprep.subr.mxu0 0.0
    %294 = vmatpush2.msra.mxu0 0.0
    %295 = vmatprep.mubr.f32.mxu0 0.0
    %296 = vmatmul.mubr.f32.gmra.mxu0 %v229
    %v297 = vpop.f32.mrf.mxu0
    %v298 = vadd.f32 0.0, %v297
    %v299 = vpop.f32.mrf.mxu0
    %300 = vdwg.mxu0
    %s301 = scalar_lea.vmem [#allocation2], 16
    %v302 = vld [vmem:[%s301] sm:$0xff]
    %v303 = vld [vmem:[%s301 + $0x8] sm:$0xff]
    %v305 = vsel %vm151, %v298, 0
    %307 = vmatprep.subr.mxu0 0.0
    %308 = vmatpush1.msra.mxu0 0.0
    %309 = vmatprep.subr.mxu0 0.0
    %310 = vmatpush1.msra.mxu0 0.0
    %311 = vmatprep.subr.mxu0 0.0
    %312 = vmatpush1.msra.mxu0 0.0
    %313 = vmatprep.subr.mxu0 0.0
    %314 = vmatpush1.msra.mxu0 0.0
    %315 = vmatprep.subr.mxu0 0.0
    %316 = vmatpush1.msra.mxu0 0.0
    %317 = vmatprep.subr.mxu0 0.0
    %318 = vmatpush1.msra.mxu0 0.0
    %319 = vmatprep.subr.mxu0 0.0
    %320 = vmatpush1.msra.mxu0 0.0
    %321 = vmatprep.subr.mxu0 0.0
    %322 = vmatpush1.msra.mxu0 0.0
    %323 = vmatprep.subr.mxu0 0.0
    %324 = vmatpush1.msra.mxu0 0.0
    %325 = vmatprep.subr.mxu0 0.0
    %326 = vmatpush1.msra.mxu0 0.0
    %327 = vmatprep.subr.mxu0 0.0
    %328 = vmatpush1.msra.mxu0 0.0
    %329 = vmatprep.subr.mxu0 0.0
    %330 = vmatpush1.msra.mxu0 0.0
    %331 = vmatprep.subr.mxu0 0.0
    %332 = vmatpush1.msra.mxu0 0.0
    %333 = vmatprep.subr.mxu0 0.0
    %334 = vmatpush1.msra.mxu0 0.0
    %335 = vmatprep.subr.mxu0 0.0
    %336 = vmatpush1.msra.mxu0 %v303
    %337 = vmatprep.subr.mxu0 0.0
    %338 = vmatpush1.msra.mxu0 %v302
    %339 = vmatprep.subr.mxu0 0.0
    %340 = vmatpush2.msra.mxu0 0.0
    %341 = vmatprep.subr.mxu0 0.0
    %342 = vmatpush2.msra.mxu0 0.0
    %343 = vmatprep.subr.mxu0 0.0
    %344 = vmatpush2.msra.mxu0 0.0
    %345 = vmatprep.subr.mxu0 0.0
    %346 = vmatpush2.msra.mxu0 0.0
    %347 = vmatprep.subr.mxu0 0.0
    %348 = vmatpush2.msra.mxu0 0.0
    %349 = vmatprep.subr.mxu0 0.0
    %350 = vmatpush2.msra.mxu0 0.0
    %351 = vmatprep.subr.mxu0 0.0
    %352 = vmatpush2.msra.mxu0 0.0
    %353 = vmatprep.subr.mxu0 0.0
    %354 = vmatpush2.msra.mxu0 0.0
    %355 = vmatprep.subr.mxu0 0.0
    %356 = vmatpush2.msra.mxu0 0.0
    %357 = vmatprep.subr.mxu0 0.0
    %358 = vmatpush2.msra.mxu0 0.0
    %359 = vmatprep.subr.mxu0 0.0
    %360 = vmatpush2.msra.mxu0 0.0
    %361 = vmatprep.subr.mxu0 0.0
    %362 = vmatpush2.msra.mxu0 0.0
    %363 = vmatprep.subr.mxu0 0.0
    %364 = vmatpush2.msra.mxu0 0.0
    %365 = vmatprep.subr.mxu0 0.0
    %366 = vmatpush2.msra.mxu0 0.0
    %367 = vmatprep.subr.mxu0 0.0
    %368 = vmatpush2.msra.mxu0 0.0
    %369 = vmatprep.subr.mxu0 0.0
    %370 = vmatpush2.msra.mxu0 0.0
    %371 = vmatprep.mubr.f32.mxu0 0.0
    %372 = vmatmul.mubr.f32.gmra.mxu0 %v305
    %v373 = vpop.f32.mrf.mxu0
    %v374 = vadd.f32 0.0, %v373
    %v375 = vpop.f32.mrf.mxu0
    %376 = vdwg.mxu0
    %v377 = vadd.f32 %v225, %v374
    %s378 = scalar_lea.vmem [#allocation5], 16
    %v379 = vld [vmem:[%s378] sm:$0xff]
    %v381 = vsel %vm75, %v379, 0
    %383 = vmatprep.subr.mxu0 0.0
    %384 = vmatpush1.msra.mxu0 0.0
    %385 = vmatprep.subr.mxu0 0.0
    %386 = vmatpush1.msra.mxu0 0.0
    %387 = vmatprep.subr.mxu0 0.0
    %388 = vmatpush1.msra.mxu0 0.0
    %389 = vmatprep.subr.mxu0 0.0
    %390 = vmatpush1.msra.mxu0 0.0
    %391 = vmatprep.subr.mxu0 0.0
    %392 = vmatpush1.msra.mxu0 0.0
    %393 = vmatprep.subr.mxu0 0.0
    %394 = vmatpush1.msra.mxu0 0.0
    %395 = vmatprep.subr.mxu0 0.0
    %396 = vmatpush1.msra.mxu0 0.0
    %397 = vmatprep.subr.mxu0 0.0
    %398 = vmatpush1.msra.mxu0 0.0
    %399 = vmatprep.subr.mxu0 0.0
    %400 = vmatpush1.msra.mxu0 0.0
    %401 = vmatprep.subr.mxu0 0.0
    %402 = vmatpush1.msra.mxu0 0.0
    %403 = vmatprep.subr.mxu0 0.0
    %404 = vmatpush1.msra.mxu0 0.0
    %405 = vmatprep.subr.mxu0 0.0
    %406 = vmatpush1.msra.mxu0 0.0
    %407 = vmatprep.subr.mxu0 0.0
    %408 = vmatpush1.msra.mxu0 0.0
    %409 = vmatprep.subr.mxu0 0.0
    %410 = vmatpush1.msra.mxu0 0.0
    %411 = vmatprep.subr.mxu0 0.0
    %412 = vmatpush1.msra.mxu0 0.0
    %413 = vmatprep.subr.mxu0 0.0
    %414 = vmatpush1.msra.mxu0 %v52
    %415 = vmatprep.subr.mxu0 0.0
    %416 = vmatpush2.msra.mxu0 0.0
    %417 = vmatprep.subr.mxu0 0.0
    %418 = vmatpush2.msra.mxu0 0.0
    %419 = vmatprep.subr.mxu0 0.0
    %420 = vmatpush2.msra.mxu0 0.0
    %421 = vmatprep.subr.mxu0 0.0
    %422 = vmatpush2.msra.mxu0 0.0
    %423 = vmatprep.subr.mxu0 0.0
    %424 = vmatpush2.msra.mxu0 0.0
    %425 = vmatprep.subr.mxu0 0.0
    %426 = vmatpush2.msra.mxu0 0.0
    %427 = vmatprep.subr.mxu0 0.0
    %428 = vmatpush2.msra.mxu0 0.0
    %429 = vmatprep.subr.mxu0 0.0
    %430 = vmatpush2.msra.mxu0 0.0
    %431 = vmatprep.subr.mxu0 0.0
    %432 = vmatpush2.msra.mxu0 0.0
    %433 = vmatprep.subr.mxu0 0.0
    %434 = vmatpush2.msra.mxu0 0.0
    %435 = vmatprep.subr.mxu0 0.0
    %436 = vmatpush2.msra.mxu0 0.0
    %437 = vmatprep.subr.mxu0 0.0
    %438 = vmatpush2.msra.mxu0 0.0
    %439 = vmatprep.subr.mxu0 0.0
    %440 = vmatpush2.msra.mxu0 0.0
    %441 = vmatprep.subr.mxu0 0.0
    %442 = vmatpush2.msra.mxu0 0.0
    %443 = vmatprep.subr.mxu0 0.0
    %444 = vmatpush2.msra.mxu0 0.0
    %445 = vmatprep.subr.mxu0 0.0
    %446 = vmatpush2.msra.mxu0 0.0
    %447 = vmatprep.mubr.f32.mxu0 0.0
    %448 = vmatmul.mubr.f32.gmra.mxu0 %v381
    %v449 = vpop.f32.mrf.mxu0
    %v450 = vadd.f32 0.0, %v449
    %v451 = vpop.f32.mrf.mxu0
    %452 = vdwg.mxu0
    %s453 = scalar_lea.vmem [#allocation2], 32
    %v454 = vld [vmem:[%s453] sm:$0xff]
    %v455 = vld [vmem:[%s453 + $0x8] sm:$0xff]
    %v457 = vsel %vm151, %v450, 0
    %459 = vmatprep.subr.mxu0 0.0
    %460 = vmatpush1.msra.mxu0 0.0
    %461 = vmatprep.subr.mxu0 0.0
    %462 = vmatpush1.msra.mxu0 0.0
    %463 = vmatprep.subr.mxu0 0.0
    %464 = vmatpush1.msra.mxu0 0.0
    %465 = vmatprep.subr.mxu0 0.0
    %466 = vmatpush1.msra.mxu0 0.0
    %467 = vmatprep.subr.mxu0 0.0
    %468 = vmatpush1.msra.mxu0 0.0
    %469 = vmatprep.subr.mxu0 0.0
    %470 = vmatpush1.msra.mxu0 0.0
    %471 = vmatprep.subr.mxu0 0.0
    %472 = vmatpush1.msra.mxu0 0.0
    %473 = vmatprep.subr.mxu0 0.0
    %474 = vmatpush1.msra.mxu0 0.0
    %475 = vmatprep.subr.mxu0 0.0
    %476 = vmatpush1.msra.mxu0 0.0
    %477 = vmatprep.subr.mxu0 0.0
    %478 = vmatpush1.msra.mxu0 0.0
    %479 = vmatprep.subr.mxu0 0.0
    %480 = vmatpush1.msra.mxu0 0.0
    %481 = vmatprep.subr.mxu0 0.0
    %482 = vmatpush1.msra.mxu0 0.0
    %483 = vmatprep.subr.mxu0 0.0
    %484 = vmatpush1.msra.mxu0 0.0
    %485 = vmatprep.subr.mxu0 0.0
    %486 = vmatpush1.msra.mxu0 0.0
    %487 = vmatprep.subr.mxu0 0.0
    %488 = vmatpush1.msra.mxu0 %v455
    %489 = vmatprep.subr.mxu0 0.0
    %490 = vmatpush1.msra.mxu0 %v454
    %491 = vmatprep.subr.mxu0 0.0
    %492 = vmatpush2.msra.mxu0 0.0
    %493 = vmatprep.subr.mxu0 0.0
    %494 = vmatpush2.msra.mxu0 0.0
    %495 = vmatprep.subr.mxu0 0.0
    %496 = vmatpush2.msra.mxu0 0.0
    %497 = vmatprep.subr.mxu0 0.0
    %498 = vmatpush2.msra.mxu0 0.0
    %499 = vmatprep.subr.mxu0 0.0
    %500 = vmatpush2.msra.mxu0 0.0
    %501 = vmatprep.subr.mxu0 0.0
    %502 = vmatpush2.msra.mxu0 0.0
    %503 = vmatprep.subr.mxu0 0.0
    %504 = vmatpush2.msra.mxu0 0.0
    %505 = vmatprep.subr.mxu0 0.0
    %506 = vmatpush2.msra.mxu0 0.0
    %507 = vmatprep.subr.mxu0 0.0
    %508 = vmatpush2.msra.mxu0 0.0
    %509 = vmatprep.subr.mxu0 0.0
    %510 = vmatpush2.msra.mxu0 0.0
    %511 = vmatprep.subr.mxu0 0.0
    %512 = vmatpush2.msra.mxu0 0.0
    %513 = vmatprep.subr.mxu0 0.0
    %514 = vmatpush2.msra.mxu0 0.0
    %515 = vmatprep.subr.mxu0 0.0
    %516 = vmatpush2.msra.mxu0 0.0
    %517 = vmatprep.subr.mxu0 0.0
    %518 = vmatpush2.msra.mxu0 0.0
    %519 = vmatprep.subr.mxu0 0.0
    %520 = vmatpush2.msra.mxu0 0.0
    %521 = vmatprep.subr.mxu0 0.0
    %522 = vmatpush2.msra.mxu0 0.0
    %523 = vmatprep.mubr.f32.mxu0 0.0
    %524 = vmatmul.mubr.f32.gmra.mxu0 %v457
    %v525 = vpop.f32.mrf.mxu0
    %v526 = vadd.f32 0.0, %v525
    %v527 = vpop.f32.mrf.mxu0
    %528 = vdwg.mxu0
    %v529 = vadd.f32 %v377, %v526
    %530 = vst [vmem:[#allocation7] sm:$0xff] %v529
    // Predicated region
    $region34: #{tpu_custom_call.1} parent=1 // pred_check
      _
    $region35: #{tpu_custom_call.1} parent=1 // pred_check_branch
      %532 = sbr.rel (0) target = $region37
    $region36: #{tpu_custom_call.1} parent=1 // pred_region
      %s534 = ssub.s32 128, 128
      %535 = vsyncadd [#allocation4], %s534
      %s537 = sshll.u32 [#allocation7], 4
      %s538 = int_to_ptr.vmem [resolvable:$true] %s537
      %540 = dma.vmem_to_hbm [thread:$0]  %s538, 128, %s6, [#allocation4]
    $region37: #{tpu_custom_call.1} parent=1 // pred_fallthru
      _
    // Predicated region
    $region38: #{tpu_custom_call.1} parent=1 // pred_check
      _
    $region39: #{tpu_custom_call.1} parent=1 // pred_check_branch
      %542 = sbr.rel (0) target = $region41
    $region40: #{tpu_custom_call.1} parent=1 // pred_region
      %543 = dma.done [#allocation4], 128
    $region41: #{tpu_custom_call.1} parent=1 // pred_fallthru
      _
    %544 = vsyncpa [#allocation3], 1
    %545 = vsyncpa [#allocation6], 1
    %546 = vsyncpa [#allocation4], 1

</llo_original>
